<compile_context>
chip_gen: v7x
topology: tpu7x:2x2x1
jax: 0.10.0
libtpu: 0.0.40
codegen_flags: <defaults>
</compile_context>

<pallas_src>
import functools
import math

import jax
import jax.numpy as jnp
import numpy as np
from jax import lax
from jax.experimental import pallas as pl
from jax.experimental.pallas import tpu as pltpu

# ---------------- small synthetic RoFormer config ----------------
BATCH = 2
SEQ = 16
HIDDEN = 128          # stands in for 768
NUM_HEADS = 4
HEAD_DIM = HIDDEN // NUM_HEADS
INTER = 256
NUM_LAYERS = 2
VOCAB = 64
TYPE_VOCAB = 2
LN_EPS = 1e-12
MASK_MIN = float(np.finfo(np.float32).min)
TOKENS = BATCH * SEQ


# ---------------- shared in-kernel helpers (f32 math) ----------------
def _layer_norm(x, g, b):
    mu = jnp.mean(x, axis=-1, keepdims=True)
    var = jnp.mean(jnp.square(x - mu), axis=-1, keepdims=True)
    return (x - mu) * lax.rsqrt(var + LN_EPS) * g + b


def _gelu_erf(x):
    return 0.5 * x * (1.0 + lax.erf(x * (1.0 / math.sqrt(2.0))))


# ---------------- roll-direction probe ----------------
# pltpu.roll is expected to follow jnp.roll semantics (y[i] = x[i - shift]).
# Probe it once at setup so the signed-sin rotary tables are always paired
# with the correct roll direction, guaranteeing rotate-half correctness.
_ROLL_IS_JNP_LIKE = None


def _roll_matches_jnp():
    global _ROLL_IS_JNP_LIKE
    if _ROLL_IS_JNP_LIKE is None:
        def probe(x_ref, o_ref):
            o_ref[...] = pltpu.roll(x_ref[...], 1, axis=1)

        x = jnp.tile(jnp.arange(128, dtype=jnp.float32)[None, :], (8, 1))
        y = pl.pallas_call(
            probe, out_shape=jax.ShapeDtypeStruct((8, 128), jnp.float32))(x)
        _ROLL_IS_JNP_LIKE = bool(float(np.asarray(y)[0, 1]) == 0.0)
    return _ROLL_IS_JNP_LIKE


# ---------------- rotary tables (matches HF RoFormer pair convention) ----------------
@functools.lru_cache(maxsize=None)
def rotary_tables():
    pos = np.arange(SEQ, dtype=np.float64)[:, None]                  # (S, 1)
    idx = np.arange(HEAD_DIM // 2, dtype=np.float64)[None, :]        # (1, d/2)
    inv_freq = 1.0 / np.power(10000.0, (2.0 * idx) / HEAD_DIM)
    ang = pos * inv_freq                                             # (S, d/2)
    sin_pair = np.repeat(np.sin(ang), 2, axis=-1)                    # (S, d)
    cos_pair = np.repeat(np.cos(ang), 2, axis=-1)
    sin_sh = np.tile(sin_pair, (1, NUM_HEADS)).astype(np.float32)    # (S, H)
    cos_sh = np.tile(cos_pair, (1, NUM_HEADS)).astype(np.float32)

    # rotate_half(q)*sin == roll_to(q[i+1]) * (-sin @ even lanes)
    #                     + roll_to(q[i-1]) * (+sin @ odd  lanes)
    even = (np.arange(HIDDEN) % 2 == 0)[None, :]
    sin_even_neg = np.where(even, -sin_sh, 0.0).astype(np.float32)   # pairs with x[i+1]
    sin_odd_pos = np.where(even, 0.0, sin_sh).astype(np.float32)     # pairs with x[i-1]

    if _roll_matches_jnp():
        sin_p1 = sin_odd_pos       # pltpu.roll(x, 1):        y[i] = x[i-1]
        sin_m1 = sin_even_neg      # pltpu.roll(x, H-1):      y[i] = x[i+1]
    else:                          # (flipped convention)
        sin_p1 = sin_even_neg
        sin_m1 = sin_odd_pos

    # tile across the batch for the flattened (B*S, H) activation layout
    cos_t = np.tile(cos_sh, (BATCH, 1))
    sin_p1 = np.tile(sin_p1, (BATCH, 1))
    sin_m1 = np.tile(sin_m1, (BATCH, 1))
    return (jnp.asarray(cos_t), jnp.asarray(sin_p1), jnp.asarray(sin_m1),
            jnp.asarray(cos_sh), jnp.asarray(sin_sh))


# ---------------- the fused whole-model Pallas kernel ----------------
def roformer_kernel(
        x_emb_ref, mask_ref, cos_ref, sinp_ref, sinm_ref,
        embg_ref, embb_ref, poolw_ref, poolb_ref,
        wqkv_ref, bqkv_ref, wo_ref, bo_ref, ln1g_ref, ln1b_ref,
        wi_ref, bi_ref, wo2_ref, bo2_ref, ln2g_ref, ln2b_ref,
        out_ref, act_ref):
    layer = pl.program_id(0)

    # --- fused embedding LayerNorm (first grid step only) ---
    @pl.when(layer == 0)
    def _():
        act_ref[...] = _layer_norm(x_emb_ref[...], embg_ref[...], embb_ref[...])

    x = act_ref[...]                                  # (TOKENS, H) f32
    cos = cos_ref[...]
    sin_p = sinp_ref[...]
    sin_m = sinm_ref[...]
    mask = mask_ref[...]                              # (B, S) additive mask

    # --- fused QKV projection: one bf16 MXU matmul, f32 accumulate ---
    qkv = jnp.dot(x.astype(jnp.bfloat16), wqkv_ref[0],
                  preferred_element_type=jnp.float32) + bqkv_ref[0]
    q = qkv[:, 0 * HIDDEN:1 * HIDDEN]                 # 128-aligned lane slices
    k = qkv[:, 1 * HIDDEN:2 * HIDDEN]
    v = qkv[:, 2 * HIDDEN:3 * HIDDEN]

    # --- rotary embedding via XLU lane rolls (sign folded into sin tables);
    #     cross-pair leakage of the rolls is multiplied by zero.
    def rope(t):
        return (t * cos
                + pltpu.roll(t, 1, axis=1) * sin_p
                + pltpu.roll(t, HIDDEN - 1, axis=1) * sin_m)

    q = rope(q) * (1.0 / math.sqrt(HEAD_DIM))
    k = rope(k)
    v16 = v.astype(jnp.bfloat16)
    wo_l = wo_ref[0]                                  # (H, H) bf16

    # --- per-(batch, head) attention; each head folds straight into the
    #     matching 32-row slice of W_o (no lane-axis concatenate). ---
    attn_chunks = []
    for b in range(BATCH):
        rows = slice(b * SEQ, (b + 1) * SEQ)
        mask_b = mask[b:b + 1, :]                     # (1, S)
        acc = jnp.zeros((SEQ, HIDDEN), jnp.float32)
        for h in range(NUM_HEADS):
            cols = slice(h * HEAD_DIM, (h + 1) * HEAD_DIM)
            s = lax.dot_general(q[rows, cols], k[rows, cols],
                                (((1,), (1,)), ((), ())),
                                preferred_element_type=jnp.float32)   # (S, S)
            s = s + mask_b
            s = s - jnp.max(s, axis=-1, keepdims=True)
            p = jnp.exp(s)
            p = p * pl.reciprocal(jnp.sum(p, axis=-1, keepdims=True),
                                  approx=True)
            ctx = jnp.dot(p.astype(jnp.bfloat16), v16[rows, cols],
                          preferred_element_type=jnp.float32)          # (S, HD)
            acc = acc + jnp.dot(ctx.astype(jnp.bfloat16), wo_l[cols, :],
                                preferred_element_type=jnp.float32)    # (S, H)
        attn_chunks.append(acc)
    attn_out = jnp.concatenate(attn_chunks, axis=0) + bo_ref[0]        # (TOKENS, H)

    h1 = _layer_norm(attn_out + x, ln1g_ref[0], ln1b_ref[0])

    # --- feed-forward (bf16 MXU, f32 GELU / LN) ---
    inter = jnp.dot(h1.astype(jnp.bfloat16), wi_ref[0],
                    preferred_element_type=jnp.float32) + bi_ref[0]
    inter = _gelu_erf(inter)
    ffn = jnp.dot(inter.astype(jnp.bfloat16), wo2_ref[0],
                  preferred_element_type=jnp.float32) + bo2_ref[0]
    y = _layer_norm(ffn + h1, ln2g_ref[0], ln2b_ref[0])
    act_ref[...] = y

    # --- fused pooler on the last layer: CLS token -> Linear -> tanh ---
    @pl.when(layer == NUM_LAYERS - 1)
    def _():
        cls = jnp.concatenate(
            [y[b * SEQ:b * SEQ + 1, :] for b in range(BATCH)], axis=0)  # (B, H)
        out_ref[...] = jnp.tanh(
            jnp.dot(cls.astype(jnp.bfloat16), poolw_ref[...],
                    preferred_element_type=jnp.float32) + poolb_ref[...])


# ---------------- pallas_call wrapper ----------------
def _const_spec(shape):
    zeros = (0,) * len(shape)
    return pl.BlockSpec(shape, lambda l, _z=zeros: _z)


def _layer_spec(per_layer_shape):
    block = (1,) + tuple(per_layer_shape)
    zeros = (0,) * len(per_layer_shape)
    return pl.BlockSpec(block, lambda l, _z=zeros: (l,) + _z)


def roformer_doc2vec(params, input_ids, token_type_ids, attention_mask):
    cos_t, sin_p, sin_m, _, _ = rotary_tables()
    # embedding lookup (data-dependent gather) stays in XLA glue
    x = params["word_emb"][input_ids] + params["tok_emb"][token_type_ids]
    x = x.reshape(TOKENS, HIDDEN)
    # additive extended attention mask, HF convention: (1 - mask) * finfo.min
    mask_add = (1.0 - attention_mask.astype(jnp.float32)) * MASK_MIN    # (B, S)
    lw = params["layers"]

    in_specs = [
        _const_spec((TOKENS, HIDDEN)),        # x_emb
        _const_spec((BATCH, SEQ)),            # additive mask
        _const_spec((TOKENS, HIDDEN)),        # cos
        _const_spec((TOKENS, HIDDEN)),        # sin for roll(+1)
        _const_spec((TOKENS, HIDDEN)),        # sin for roll(H-1)
        _const_spec((1, HIDDEN)),             # embed LN gamma
        _const_spec((1, HIDDEN)),             # embed LN beta
        _const_spec((HIDDEN, HIDDEN)),        # pooler weight (bf16)
        _const_spec((1, HIDDEN)),             # pooler bias
        _layer_spec((HIDDEN, 3 * HIDDEN)),    # fused QKV weight (bf16)
        _layer_spec((1, 3 * HIDDEN)),         # fused QKV bias
        _layer_spec((HIDDEN, HIDDEN)),        # attn output weight (bf16)
        _layer_spec((1, HIDDEN)),             # attn output bias
        _layer_spec((1, HIDDEN)),             # LN1 gamma
        _layer_spec((1, HIDDEN)),             # LN1 beta
        _layer_spec((HIDDEN, INTER)),         # intermediate weight (bf16)
        _layer_spec((1, INTER)),              # intermediate bias
        _layer_spec((INTER, HIDDEN)),         # FFN output weight (bf16)
        _layer_spec((1, HIDDEN)),             # FFN output bias
        _layer_spec((1, HIDDEN)),             # LN2 gamma
        _layer_spec((1, HIDDEN)),             # LN2 beta
    ]

    return pl.pallas_call(
        roformer_kernel,
        out_shape=jax.ShapeDtypeStruct((BATCH, HIDDEN), jnp.float32),
        grid=(NUM_LAYERS,),
        in_specs=in_specs,
        out_specs=pl.BlockSpec((BATCH, HIDDEN), lambda l: (0, 0)),
        scratch_shapes=[pltpu.VMEM((TOKENS, HIDDEN), jnp.float32)],
        compiler_params=pltpu.CompilerParams(
            dimension_semantics=("arbitrary",),      # scratch carries across layers
            vmem_limit_bytes=32 * 1024 * 1024),
    )(x, mask_add, cos_t, sin_p, sin_m,
      params["emb_ln_g"], params["emb_ln_b"], params["pool_w"], params["pool_b"],
      lw["wqkv"], lw["bqkv"], lw["wo"], lw["bo"], lw["ln1g"], lw["ln1b"],
      lw["wi"], lw["bi"], lw["wo2"], lw["bo2"], lw["ln2g"], lw["ln2b"])


# ---------------- parameter init (deterministic, synthetic) ----------------
def init_params(key):
    keys = iter(jax.random.split(key, 40))

    def w(shape, scale=0.05):
        return jax.random.normal(next(keys), shape, dtype=jnp.float32) * scale

    def per_layer(shape):
        return jnp.stack([w(shape) for _ in range(NUM_LAYERS)], axis=0)

    layers = {
        "wqkv": per_layer((HIDDEN, 3 * HIDDEN)).astype(jnp.bfloat16),
        "bqkv": per_layer((1, 3 * HIDDEN)),
        "wo":   per_layer((HIDDEN, HIDDEN)).astype(jnp.bfloat16),
        "bo":   per_layer((1, HIDDEN)),
        "ln1g": jnp.ones((NUM_LAYERS, 1, HIDDEN), jnp.float32),
        "ln1b": jnp.zeros((NUM_LAYERS, 1, HIDDEN), jnp.float32),
        "wi":   per_layer((HIDDEN, INTER)).astype(jnp.bfloat16),
        "bi":   per_layer((1, INTER)),
        "wo2":  per_layer((INTER, HIDDEN)).astype(jnp.bfloat16),
        "bo2":  per_layer((1, HIDDEN)),
        "ln2g": jnp.ones((NUM_LAYERS, 1, HIDDEN), jnp.float32),
        "ln2b": jnp.zeros((NUM_LAYERS, 1, HIDDEN), jnp.float32),
    }
    return {
        "word_emb": w((VOCAB, HIDDEN)),
        "tok_emb": w((TYPE_VOCAB, HIDDEN)),
        "emb_ln_g": jnp.ones((1, HIDDEN), jnp.float32),
        "emb_ln_b": jnp.zeros((1, HIDDEN), jnp.float32),
        "pool_w": w((HIDDEN, HIDDEN)).astype(jnp.bfloat16),
        "pool_b": w((1, HIDDEN)),
        "layers": layers,
    }


# ---------------- pure-JAX f32 reference (same bf16-rounded weights) ----------------
def ref_forward(params, input_ids, token_type_ids, attention_mask):
    _, _, _, cos_sh, sin_sh = rotary_tables()

    def ln(t, g, b):
        mu = jnp.mean(t, -1, keepdims=True)
        var = jnp.mean(jnp.square(t - mu), -1, keepdims=True)
        return (t - mu) / jnp.sqrt(var + LN_EPS) * g + b

    def rotate_half(t):
        t1 = t[..., 0::2]
        t2 = t[..., 1::2]
        return jnp.stack([-t2, t1], axis=-1).reshape(t.shape)

    lw = params["layers"]
    x = params["word_emb"][input_ids] + params["tok_emb"][token_type_ids]
    x = ln(x, params["emb_ln_g"], params["emb_ln_b"])
    mask4 = ((1.0 - attention_mask.astype(jnp.float32)) * MASK_MIN)[:, None, None, :]
    scale = 1.0 / math.sqrt(HEAD_DIM)
    B = x.shape[0]
    for l in range(NUM_LAYERS):
        qkv = x @ lw["wqkv"][l].astype(jnp.float32) + lw["bqkv"][l]
        q = qkv[..., 0 * HIDDEN:1 * HIDDEN]
        k = qkv[..., 1 * HIDDEN:2 * HIDDEN]
        v = qkv[..., 2 * HIDDEN:3 * HIDDEN]
        q = q * cos_sh + rotate_half(q) * sin_sh
        k = k * cos_sh + rotate_half(k) * sin_sh
        qh = q.reshape(B, SEQ, NUM_HEADS, HEAD_DIM).transpose(0, 2, 1, 3)
        kh = k.reshape(B, SEQ, NUM_HEADS, HEAD_DIM).transpose(0, 2, 1, 3)
        vh = v.reshape(B, SEQ, NUM_HEADS, HEAD_DIM).transpose(0, 2, 1, 3)
        s = jnp.einsum("bhqd,bhkd->bhqk", qh, kh) * scale + mask4
        p = jax.nn.softmax(s, axis=-1)
        ctx = jnp.einsum("bhqk,bhkd->bhqd", p, vh)
        ctx = ctx.transpose(0, 2, 1, 3).reshape(B, SEQ, HIDDEN)
        h1 = ln(ctx @ lw["wo"][l].astype(jnp.float32) + lw["bo"][l] + x,
                lw["ln1g"][l], lw["ln1b"][l])
        inter = h1 @ lw["wi"][l].astype(jnp.float32) + lw["bi"][l]
        inter = 0.5 * inter * (1.0 + lax.erf(inter / math.sqrt(2.0)))
        x = ln(inter @ lw["wo2"][l].astype(jnp.float32) + lw["bo2"][l] + h1,
               lw["ln2g"][l], lw["ln2b"][l])
    cls = x[:, 0, :]
    return jnp.tanh(cls @ params["pool_w"].astype(jnp.float32) + params["pool_b"])


if __name__ == "__main__":
    key = jax.random.PRNGKey(0)
    k_param, k_ids = jax.random.split(key)

    params = init_params(k_param)
    input_ids = jax.random.randint(k_ids, (BATCH, SEQ), 0, VOCAB, dtype=jnp.int32)
    token_type_ids = jnp.zeros((BATCH, SEQ), dtype=jnp.int32)
    attention_mask = jnp.ones((BATCH, SEQ), dtype=jnp.int32)
    attention_mask = attention_mask.at[1, SEQ - 4:].set(0)   # pad tail of batch 1

    out = jax.block_until_ready(
        roformer_doc2vec(params, input_ids, token_type_ids, attention_mask))
    ref = jax.block_until_ready(
        ref_forward(params, input_ids, token_type_ids, attention_mask))

    # bf16 MXU inputs + approx softmax reciprocal -> slightly looser tolerance.
    np.testing.assert_allclose(np.asarray(out), np.asarray(ref),
                               atol=2e-2, rtol=2e-2)
    print("KERNEL_OK")
</pallas_src>

<mosaic_0001>
module attributes {stable_mosaic.version = 11 : i64} {
  func.func @probe(%arg0: memref<8x128xf32, #tpu.memory_space<vmem>>, %arg1: memref<8x128xf32, #tpu.memory_space<vmem>>) attributes {dimension_semantics = [], scalar_prefetch = 0 : i64, scratch_operands = 0 : i64, tpu.core_type = #tpu.core_type<tc>} {
    %c0 = arith.constant 0 : index
    %c0_0 = arith.constant 0 : index
    %0 = vector.load %arg0[%c0, %c0_0] : memref<8x128xf32, #tpu.memory_space<vmem>>, vector<8x128xf32>
    %c1_i32 = arith.constant 1 : i32
    %1 = tpu.dynamic_rotate %0 by %c1_i32 dim 1 : vector<8x128xf32>, i32 -> vector<8x128xf32>
    %c0_1 = arith.constant 0 : index
    %c0_2 = arith.constant 0 : index
    %2 = vector.load %arg1[%c0_1, %c0_2] : memref<8x128xf32, #tpu.memory_space<vmem>>, vector<8x128xf32>
    tpu.vector_store %arg1[%c0_1, %c0_2], %1 {strides = array<i32>} : memref<8x128xf32, #tpu.memory_space<vmem>>, vector<8x128xf32>,
    return
  }
}

</mosaic_0001>

<llo_original>
// kernel: tpu_custom_call.1
$region0: #{tpu_custom_call.1}
  #allocation0 [shape = 'u32[]', space=smem, size = 0x4, offset = 0x4, fixed_abs, tag = 'smem constant byte address 0x4 - core index']
  #allocation1 [shape = 'u32[144,128]{1,0:T(1,128)}', space=vmem, size = 0x12000, scoped, tag = 'internal scratch']
  %s0 = inlined_call_operand.hbm [shape: f32[8,128], index: 0, kind: input, shape index: {}]
  %s1 = inlined_call_operand.hbm [shape: f32[8,128], index: 1, kind: output, shape index: {}]
  %s2 = sld [smem:[#allocation0]]
  $region18: #{tpu_custom_call.1} parent=0
    _
  %s4 = ssub.s32 1, %s2
  %s5 = scalar_select 0, %s4, %s2
  $region1: #{tpu_custom_call.1} parent=0
    #allocation2 [shape = 'u8[4096]{0}', space=vmem, size = 0x1000, scoped, tag = 'input window, operand 0, single buffered']
    #allocation3 [shape = 's32[1]{0}', space=sflag, size = 0x4, scoped, tag = 'scoped memory for tpu_custom_call.1']
    #allocation4 [shape = 's32[1]{0}', space=sflag, size = 0x4, scoped, tag = 'scoped memory for tpu_custom_call.1']
    #allocation5 [shape = 'u8[4096]{0}', space=vmem, size = 0x1000, scoped, tag = 'output window, operand 0, single buffered']
    %6 = vsyncpa [#allocation3], 0
    %7 = vsyncpa [#allocation4], 0
    // Predicated region
    $region2: #{tpu_custom_call.1} parent=1 // pred_check
      _
    $region3: #{tpu_custom_call.1} parent=1 // pred_check_branch
      %9 = sbr.rel (0) target = $region5
    $region4: #{tpu_custom_call.1} parent=1 // pred_region
      %s11 = ssub.s32 128, 128
      %12 = vsyncadd [#allocation3], %s11
      %s14 = sshll.u32 [#allocation2], 4
      %s15 = int_to_ptr.vmem [resolvable:$true] %s14
      %17 = dma.hbm_to_vmem [thread:$0]  %s0, 128, %s15, [#allocation3]
    $region5: #{tpu_custom_call.1} parent=1 // pred_fallthru
      _
    // Predicated region
    $region6: #{tpu_custom_call.1} parent=1 // pred_check
      _
    $region7: #{tpu_custom_call.1} parent=1 // pred_check_branch
      %19 = sbr.rel (0) target = $region9
    $region8: #{tpu_custom_call.1} parent=1 // pred_region
      %20 = dma.done [#allocation3], 128
    $region9: #{tpu_custom_call.1} parent=1 // pred_fallthru
      _
    %v21 = vld [vmem:[#allocation2] sm:$0xff]
    %22 = vrot.lane.b32.xlu0 %v21, 1
    %v23 = vpop.permute.xlu0 %22
    %24 = vst [vmem:[#allocation5] sm:$0xff] %v23
    // Predicated region
    $region10: #{tpu_custom_call.1} parent=1 // pred_check
      _
    $region11: #{tpu_custom_call.1} parent=1 // pred_check_branch
      %26 = sbr.rel (0) target = $region13
    $region12: #{tpu_custom_call.1} parent=1 // pred_region
      %s28 = ssub.s32 128, 128
      %29 = vsyncadd [#allocation4], %s28
      %s31 = sshll.u32 [#allocation5], 4
      %s32 = int_to_ptr.vmem [resolvable:$true] %s31
      %34 = dma.vmem_to_hbm [thread:$0]  %s32, 128, %s1, [#allocation4]
    $region13: #{tpu_custom_call.1} parent=1 // pred_fallthru
      _
    // Predicated region
    $region14: #{tpu_custom_call.1} parent=1 // pred_check
      _
    $region15: #{tpu_custom_call.1} parent=1 // pred_check_branch
      %36 = sbr.rel (0) target = $region17
    $region16: #{tpu_custom_call.1} parent=1 // pred_region
      %37 = dma.done [#allocation4], 128
    $region17: #{tpu_custom_call.1} parent=1 // pred_fallthru
      _
    %38 = vsyncpa [#allocation3], 1
    %39 = vsyncpa [#allocation4], 1

</llo_original>
